<compile_context>
chip_gen: v5e
topology: v5e:2x2
jax: 0.10.0
libtpu: 0.0.40
codegen_flags: <defaults>
</compile_context>

<pallas_src>
import functools

import jax
import jax.numpy as jnp
from jax.experimental import pallas as pl
from jax.experimental.pallas import tpu as pltpu

_INV_LN10 = 0.4342944819032518     # 1 / ln(10)
_LOG2_10 = 3.321928094887362       # log2(10)
_LOG2_EPS = -23.253496664211536    # log2(1e-7)

# Three ~equal buckets over the signed int32 range (h ~ uniform 32-bit):
#   h < T1 -> -1 ;  h < T2 -> 0 ;  else -> +1
_T1 = -715827883                   # -2**31 + floor(2**32 / 3)
_T2 = 715827882                    # -2**31 + 2 * floor(2**32 / 3)

_C1 = -1640531535                  # 0x9E3779B1 (golden-ratio odd constant)
_C2 = -2048144789                  # 0x85EBCA6B (murmur3 fmix32 constant)


def _calc_error_kernel(seed_ref, x_ref, o_ref, *, lane_shift, use_hw_prng):
    x = x_ref[...]
    tile_rows, lane = x_ref.shape

    # ---- per-element draw from {-1, 0, 1} -----------------------------------
    if use_hw_prng:
        # Real-TPU (Mosaic) path: hardware PRNG, re-seeded per tile so tiles
        # stay independent and the grid axis remains "parallel".
        pltpu.prng_seed(seed_ref[0] + pl.program_id(0))
        h = pltpu.bitcast(pltpu.prng_random_bits(x.shape), jnp.int32)
    else:
        # Portable fallback: hash of the global element index (int32 VPU ops).
        # mul -> xorshift -> mul fully avalanches into the high bits used by the
        # threshold compares; fmix32's final xorshift is dropped (low bits are
        # never inspected).  int32 multiplies wrap, which is intended.
        row = jax.lax.broadcasted_iota(jnp.int32, x.shape, 0)
        col = jax.lax.broadcasted_iota(jnp.int32, x.shape, 1)
        # All scalar contributions folded into a single scalar-unit constant.
        base = pl.program_id(0) * (tile_rows * lane) + seed_ref[0] * _C1
        g = (row << lane_shift) + col + base           # global linear index
        h = g * _C2
        h = h ^ jax.lax.shift_right_logical(h, 16)
        h = h * _C1

    # ---- eps * 10**floor(log10|x|): exactly 2 EUP ops (log, exp2) ------------
    absx = jnp.abs(x)
    m = jnp.floor(jnp.log(absx) * _INV_LN10)           # floor(log10|x|)
    scale = jnp.exp2(m * _LOG2_10 + _LOG2_EPS)          # == 1e-7 * 10**m ; 0 at x==0

    # Noise selected directly between {-scale, 0, +scale}.
    noise = jnp.where(h < _T1, -scale, jnp.where(h < _T2, 0.0, scale))
    o_ref[...] = x + noise


def pseudo_calc_error(x, seed=0, *, donate=False, use_hw_prng=False):
    """PseudoCalcError: out = x + (1e-7 * 10**floor(log10|x|)) * randint{-1,0,1}.

    donate=True      alias the input buffer to the output (in-place update when
                     the caller donates x; leave False if x is still needed).
    use_hw_prng=True use the TPU hardware PRNG (Mosaic only; keep False when
                     running under the Pallas interpreter).
    """
    if x.dtype != jnp.float32:
        raise ValueError("Only float32 is supported on TPU")

    orig_shape = x.shape
    flat = x.reshape(-1)            # free (bitcast) for contiguous layouts
    total = flat.size
    if total == 0:
        return x

    # Widest power-of-two lane slab that divides the element count -> zero-copy
    # reshape, unmasked lane-dense stores.
    lane = next((l for l in (1024, 512, 256, 128) if total % l == 0), None)
    padded = 0
    if lane is None:
        # TODO(synk): element counts not divisible by 128 still pay one pad and
        # one slice HBM round trip; a fully general fix needs a manual-DMA /
        # masked-tail path that Pallas BlockSpecs cannot express for a reshape.
        lane = 128
        padded = (-total) % lane
        flat = jnp.pad(flat, (0, padded))
    rows = flat.size // lane
    x2d = flat.reshape(rows, lane)

    # ~4 MiB f32 blocks; double-buffered in+out ~16 MiB (vmem limit raised below).
    target_rows = (4 * 1024 * 1024) // (lane * 4)
    target_rows = max(8, (target_rows // 8) * 8)
    tile_rows = rows if rows <= target_rows else target_rows
    grid = (pl.cdiv(rows, tile_rows),)

    seed_arr = jnp.asarray([seed], dtype=jnp.int32)
    kernel = functools.partial(
        _calc_error_kernel,
        lane_shift=lane.bit_length() - 1,
        use_hw_prng=use_hw_prng,
    )

    out2d = pl.pallas_call(
        kernel,
        out_shape=jax.ShapeDtypeStruct((rows, lane), jnp.float32),
        grid_spec=pltpu.PrefetchScalarGridSpec(
            num_scalar_prefetch=1,
            grid=grid,
            in_specs=[pl.BlockSpec((tile_rows, lane), lambda i, seed_ref: (i, 0))],
            out_specs=pl.BlockSpec((tile_rows, lane), lambda i, seed_ref: (i, 0)),
        ),
        compiler_params=pltpu.CompilerParams(
            # Stateless per-element RNG -> tiles independent -> megacore-safe.
            dimension_semantics=("parallel",),
            vmem_limit_bytes=32 * 1024 * 1024,
        ),
        cost_estimate=pl.CostEstimate(
            flops=10 * total, transcendentals=2 * total, bytes_accessed=8 * total),
        input_output_aliases=({1: 0} if donate else {}),
    )(seed_arr, x2d)

    out = out2d
    if padded:
        out = out.reshape(-1)[:total]
    return out.reshape(orig_shape)


if __name__ == "__main__":
    key = jax.random.PRNGKey(0)
    # NCHW-like input: batch=2, channels=4, spatial=16x16 -> 2048 elements.
    x = jax.random.normal(key, (2, 4, 16, 16), dtype=jnp.float32) * 10.0

    out = jax.block_until_ready(pseudo_calc_error(x, seed=0))

    assert out.shape == x.shape and out.dtype == x.dtype

    # Reference per-element eps (same decade formulation as the kernel).
    absx = jnp.abs(x)
    m_ref = jnp.floor(jnp.log(absx) * _INV_LN10)
    eps_ref = jnp.where(absx > 0, jnp.exp2(m_ref * _LOG2_10 + _LOG2_EPS), 0.0)

    diff = jnp.abs(out - x)
    # |out - x| <= eps plus up to ~1 ulp(x) of rounding from the final f32 add.
    tol = eps_ref * 1.01 + absx * (2.0 ** -23) + 1e-30
    assert bool(jnp.all(diff <= tol)), "noise exceeds eps * 10**floor(log10|x|)"

    # Relative perturbation ~1e-7 (the f32 add can round by up to ~1.2e-7 rel).
    max_rel = float(jnp.max(jnp.where(absx > 0, diff / absx, 0.0)))
    assert max_rel <= 2.5e-7, f"relative noise too large: {max_rel}"

    # Draws come from {-1, 0, 1}: some elements perturbed, some untouched.
    n_changed = int(jnp.sum(diff > 0))
    assert 0 < n_changed < x.size, f"unexpected noise pattern: {n_changed}/{x.size}"

    print("KERNEL_OK")
</pallas_src>

<mosaic_0001>
module attributes {stable_mosaic.version = 11 : i64} {
  func.func @_calc_error_kernel(%arg0: i32, %arg1: memref<1xi32, #tpu.memory_space<smem>>, %arg2: memref<2x1024xf32, #tpu.memory_space<vmem>>, %arg3: memref<2x1024xf32, #tpu.memory_space<vmem>>) attributes {dimension_semantics = [#tpu.dimension_semantics<parallel>], iteration_bounds = array<i64: 1>, scalar_prefetch = 1 : i64, scratch_operands = 0 : i64, tpu.core_type = #tpu.core_type<tc>, window_params = [{transform_indices = @transform_0, window_bounds = array<i64: 2, 1024>}, {transform_indices = @transform_1, window_bounds = array<i64: 2, 1024>}]} {
    %c0 = arith.constant 0 : index
    %c0_0 = arith.constant 0 : index
    %0 = vector.load %arg2[%c0, %c0_0] : memref<2x1024xf32, #tpu.memory_space<vmem>>, vector<2x1024xf32>
    %1 = tpu.iota {dimensions = array<i32: 0>} : vector<2x1024xi32>
    %2 = tpu.iota {dimensions = array<i32: 1>} : vector<2x1024xi32>
    %c2048_i32 = arith.constant 2048 : i32
    %3 = arith.muli %arg0, %c2048_i32 : i32
    %c0_1 = arith.constant 0 : index
    %4 = memref.load %arg1[%c0_1] : memref<1xi32, #tpu.memory_space<smem>>
    %c-1640531535_i32 = arith.constant -1640531535 : i32
    %5 = arith.muli %4, %c-1640531535_i32 : i32
    %6 = arith.addi %3, %5 : i32
    %c10_i32 = arith.constant 10 : i32
    %7 = vector.broadcast %c10_i32 : i32 to vector<2x1024xi32>
    %8 = arith.shli %1, %7 : vector<2x1024xi32>
    %9 = arith.addi %8, %2 : vector<2x1024xi32>
    %10 = vector.broadcast %6 : i32 to vector<2x1024xi32>
    %11 = arith.addi %9, %10 : vector<2x1024xi32>
    %c-2048144789_i32 = arith.constant -2048144789 : i32
    %12 = vector.broadcast %c-2048144789_i32 : i32 to vector<2x1024xi32>
    %13 = arith.muli %11, %12 : vector<2x1024xi32>
    %c16_i32 = arith.constant 16 : i32
    %14 = vector.broadcast %c16_i32 : i32 to vector<2x1024xi32>
    %15 = arith.shrui %13, %14 : vector<2x1024xi32>
    %16 = arith.xori %13, %15 : vector<2x1024xi32>
    %c-1640531535_i32_2 = arith.constant -1640531535 : i32
    %17 = vector.broadcast %c-1640531535_i32_2 : i32 to vector<2x1024xi32>
    %18 = arith.muli %16, %17 : vector<2x1024xi32>
    %19 = math.absf %0 : vector<2x1024xf32>
    %20 = math.log %19 : vector<2x1024xf32>
    %cst = arith.constant 0.434294492 : f32
    %21 = vector.broadcast %cst : f32 to vector<2x1024xf32>
    %22 = arith.mulf %20, %21 : vector<2x1024xf32>
    %23 = math.floor %22 : vector<2x1024xf32>
    %cst_3 = arith.constant 3.32192802 : f32
    %24 = vector.broadcast %cst_3 : f32 to vector<2x1024xf32>
    %25 = arith.mulf %23, %24 : vector<2x1024xf32>
    %cst_4 = arith.constant -23.2534962 : f32
    %26 = vector.broadcast %cst_4 : f32 to vector<2x1024xf32>
    %27 = arith.addf %25, %26 : vector<2x1024xf32>
    %28 = math.exp2 %27 : vector<2x1024xf32>
    %c-715827883_i32 = arith.constant -715827883 : i32
    %29 = vector.broadcast %c-715827883_i32 : i32 to vector<2x1024xi32>
    %30 = arith.cmpi slt, %18, %29 : vector<2x1024xi32>
    %cst_5 = arith.constant 0.000000e+00 : f32
    %31 = vector.broadcast %cst_5 : f32 to vector<2x1024xf32>
    %32 = arith.subf %31, %28 : vector<2x1024xf32>
    %c715827882_i32 = arith.constant 715827882 : i32
    %33 = vector.broadcast %c715827882_i32 : i32 to vector<2x1024xi32>
    %34 = arith.cmpi slt, %18, %33 : vector<2x1024xi32>
    %cst_6 = arith.constant 0.000000e+00 : f32
    %35 = vector.broadcast %cst_6 : f32 to vector<2x1024xf32>
    %36 = arith.select %34, %35, %28 : vector<2x1024xi1>, vector<2x1024xf32>
    %37 = arith.select %30, %32, %36 : vector<2x1024xi1>, vector<2x1024xf32>
    %38 = arith.addf %0, %37 : vector<2x1024xf32>
    %c0_7 = arith.constant 0 : index
    %c0_8 = arith.constant 0 : index
    %39 = vector.load %arg3[%c0_7, %c0_8] : memref<2x1024xf32, #tpu.memory_space<vmem>>, vector<2x1024xf32>
    tpu.vector_store %arg3[%c0_7, %c0_8], %38 {strides = array<i32>} : memref<2x1024xf32, #tpu.memory_space<vmem>>, vector<2x1024xf32>,
    return
  }
  func.func @transform_0(%arg0: i32, %arg1: memref<1xi32, #tpu.memory_space<smem>>) -> (i32, i32) {
    %c0_i32 = arith.constant 0 : i32
    %c0_i32_0 = arith.constant 0 : i32
    return %arg0, %c0_i32 : i32, i32
  }
  func.func @transform_1(%arg0: i32, %arg1: memref<1xi32, #tpu.memory_space<smem>>) -> (i32, i32) {
    %c0_i32 = arith.constant 0 : i32
    %c0_i32_0 = arith.constant 0 : i32
    return %arg0, %c0_i32 : i32, i32
  }
}

</mosaic_0001>

<llo_original>
// kernel: tpu_custom_call.1
$region0: #{tpu_custom_call.1}
  #allocation0 [shape = 'u32[]', space=smem, size = 0x4, offset = 0x4, fixed_abs, tag = 'smem constant byte address 0x4 - core index']
  #allocation1 [shape = 'u32[72,128]{1,0:T(1,128)}', space=vmem, size = 0x9000, scoped, tag = 'internal scratch']
  #allocation2 [shape = 's32[1]{0}', space=sflag, size = 0x4, scoped, tag = 'scoped memory for tpu_custom_call.1']
  #allocation3 [shape = 's32[1]{0:T(128)S(6)}', space=smem, size = 0x200, scoped, tag = 'prefetched SMEM operand 0']
  %s0 = inlined_call_operand.<no memory space> [shape: s32[1], index: 0, kind: input, shape index: {}]
  %s1 = inlined_call_operand.hbm [shape: f32[2,1024], index: 1, kind: input, shape index: {}]
  %s2 = inlined_call_operand.hbm [shape: f32[2,1024], index: 2, kind: output, shape index: {}]
  %s3 = sld [smem:[#allocation0]]
  $region18: #{tpu_custom_call.1} parent=0
    _
  %s5 = ssub.s32 1, %s3
  %s6 = scalar_select 0, %s5, %s3
  %7 = sst [smem:[#allocation3]] %s0
  $region1: #{tpu_custom_call.1} parent=0
    #allocation4 [shape = 'u8[8192]{0}', space=vmem, size = 0x2000, scoped, tag = 'input window, operand 1, single buffered']
    #allocation5 [shape = 's32[1]{0}', space=sflag, size = 0x4, scoped, tag = 'scoped memory for tpu_custom_call.1']
    #allocation6 [shape = 's32[1]{0}', space=sflag, size = 0x4, scoped, tag = 'scoped memory for tpu_custom_call.1']
    #allocation7 [shape = 'u8[8192]{0}', space=vmem, size = 0x2000, scoped, tag = 'output window, operand 0, single buffered']
    %8 = vsyncpa [#allocation5], 0
    %9 = vsyncpa [#allocation6], 0
    // Predicated region
    $region2: #{tpu_custom_call.1} parent=1 // pred_check
      _
    $region3: #{tpu_custom_call.1} parent=1 // pred_check_branch
      %11 = sbr.rel (0) target = $region5
    $region4: #{tpu_custom_call.1} parent=1 // pred_region
      %13 = vsyncadd [#allocation5], 0
      %s15 = sshll.u32 %s1, 4
      %s16 = int_to_ptr.hbm [resolvable:$true] %s15
      %s17 = sshll.u32 [#allocation4], 4
      %s18 = int_to_ptr.vmem [resolvable:$true] %s17
      %20 = dma.hbm_to_vmem [thread:$0]  %s16, 256, %s18, [#allocation5]
    $region5: #{tpu_custom_call.1} parent=1 // pred_fallthru
      _
    // Predicated region
    $region6: #{tpu_custom_call.1} parent=1 // pred_check
      _
    $region7: #{tpu_custom_call.1} parent=1 // pred_check_branch
      %22 = sbr.rel (0) target = $region9
    $region8: #{tpu_custom_call.1} parent=1 // pred_region
      %24 = dma.done [#allocation5], 256
    $region9: #{tpu_custom_call.1} parent=1 // pred_fallthru
      _
    %v25 = vld [vmem:[#allocation4] sm:$0xff]
    %v26 = vld [vmem:[#allocation4 + $0x8] sm:$0xff]
    %v27 = vlaneseq
    %v28 = vshrl.u32 %v27, 7
    %v29 = vlaneseq
    %v30 = vand.u32 %v29, 127
    %v31 = vadd.s32 %v30, 128
    %v32 = vadd.s32 %v30, 256
    %v33 = vadd.s32 %v30, 384
    %v34 = vadd.s32 %v30, 512
    %v35 = vadd.s32 %v30, 640
    %v36 = vadd.s32 %v30, 768
    %v37 = vadd.s32 %v30, 896
    %s38 = smul.u32 0, 2048
    %s39 = sld [smem:[#allocation3]]
    %s40 = smul.u32 %s39, 2654435761
    %s41 = sadd.s32 %s38, %s40
    %v42 = vshll.u32 %v28, 10
    %v43 = vadd.s32 %v42, %v30
    %v44 = vadd.s32 %v42, %v31
    %v45 = vadd.s32 %v42, %v32
    %v46 = vadd.s32 %v42, %v33
    %v47 = vadd.s32 %v42, %v34
    %v48 = vadd.s32 %v42, %v35
    %v49 = vadd.s32 %v42, %v36
    %v50 = vadd.s32 %v42, %v37
    %v51 = vstv %s41
    %v52 = vadd.s32 %v43, %v51
    %v53 = vadd.s32 %v44, %v51
    %v54 = vadd.s32 %v45, %v51
    %v55 = vadd.s32 %v46, %v51
    %v56 = vadd.s32 %v47, %v51
    %v57 = vadd.s32 %v48, %v51
    %v58 = vadd.s32 %v49, %v51
    %v59 = vadd.s32 %v50, %v51
    %v60 = vmul.u32 %v52, 2246822507
    %v61 = vmul.u32 %v53, 2246822507
    %v62 = vmul.u32 %v54, 2246822507
    %v63 = vmul.u32 %v55, 2246822507
    %v64 = vmul.u32 %v56, 2246822507
    %v65 = vmul.u32 %v57, 2246822507
    %v66 = vmul.u32 %v58, 2246822507
    %v67 = vmul.u32 %v59, 2246822507
    %v68 = vshrl.u32 %v60, 16
    %v69 = vshrl.u32 %v61, 16
    %v70 = vshrl.u32 %v62, 16
    %v71 = vshrl.u32 %v63, 16
    %v72 = vshrl.u32 %v64, 16
    %v73 = vshrl.u32 %v65, 16
    %v74 = vshrl.u32 %v66, 16
    %v75 = vshrl.u32 %v67, 16
    %v76 = vxor.u32 %v60, %v68
    %v77 = vxor.u32 %v61, %v69
    %v78 = vxor.u32 %v62, %v70
    %v79 = vxor.u32 %v63, %v71
    %v80 = vxor.u32 %v64, %v72
    %v81 = vxor.u32 %v65, %v73
    %v82 = vxor.u32 %v66, %v74
    %v83 = vxor.u32 %v67, %v75
    %v84 = vmul.u32 %v76, 2654435761
    %v85 = vmul.u32 %v77, 2654435761
    %v86 = vmul.u32 %v78, 2654435761
    %v87 = vmul.u32 %v79, 2654435761
    %v88 = vmul.u32 %v80, 2654435761
    %v89 = vmul.u32 %v81, 2654435761
    %v90 = vmul.u32 %v82, 2654435761
    %v91 = vmul.u32 %v83, 2654435761
    %v92 = vand.u32 2147483647, %v25
    %v93 = vand.u32 2147483647, %v26
    %v94 = vlog2.pop %v92
    %v95 = vmul.f32 %v94, 0.6931472
    %v96 = vlog2.pop %v93
    %v97 = vmul.f32 %v96, 0.6931472
    %v98 = vmul.f32 %v95, 0.4342945
    %v99 = vmul.f32 %v97, 0.4342945
    %v100 = vfloor.f32 %v98
    %v101 = vfloor.f32 %v99
    %v102 = vmul.f32 %v100, 3.321928
    %v103 = vmul.f32 %v101, 3.321928
    %v104 = vadd.f32 %v102, -23.253496
    %v105 = vadd.f32 %v103, -23.253496
    %v106 = vpow.pop %v104
    %v107 = vpow.pop %v105
    %vm108 = vcmp.lt.s32.totalorder %v84, 3579139413
    %vm109 = vcmp.lt.s32.totalorder %v85, 3579139413
    %vm110 = vcmp.lt.s32.totalorder %v86, 3579139413
    %vm111 = vcmp.lt.s32.totalorder %v87, 3579139413
    %vm112 = vcmp.lt.s32.totalorder %v88, 3579139413
    %vm113 = vcmp.lt.s32.totalorder %v89, 3579139413
    %vm114 = vcmp.lt.s32.totalorder %v90, 3579139413
    %vm115 = vcmp.lt.s32.totalorder %v91, 3579139413
    %v116 = vsub.f32 0.0, %v106
    %v117 = vsub.f32 0.0, %v107
    %vm118 = vcmp.lt.s32.totalorder %v84, 715827882
    %vm119 = vcmp.lt.s32.totalorder %v85, 715827882
    %vm120 = vcmp.lt.s32.totalorder %v86, 715827882
    %vm121 = vcmp.lt.s32.totalorder %v87, 715827882
    %vm122 = vcmp.lt.s32.totalorder %v88, 715827882
    %vm123 = vcmp.lt.s32.totalorder %v89, 715827882
    %vm124 = vcmp.lt.s32.totalorder %v90, 715827882
    %vm125 = vcmp.lt.s32.totalorder %v91, 715827882
    %128 = vst [vmem:[#allocation1] ss:$4 sm:$0xff] %v106
    %s129 = scalar_lea.vmem [#allocation1], 32
    %130 = vst [vmem:[%s129] ss:$4 sm:$0xff] %v107
    %v131 = vld.sshfl [vmem:[#allocation1] sm:$0xff pattern:$0x73625140]
    %v132 = vld.sshfl [vmem:[#allocation1 + $0x8] sm:$0xff pattern:$0x73625140]
    %v133 = vld.sshfl [vmem:[#allocation1 + $0x10] sm:$0xff pattern:$0x73625140]
    %v134 = vld.sshfl [vmem:[#allocation1 + $0x18] sm:$0xff pattern:$0x73625140]
    %v135 = vld.sshfl [vmem:[#allocation1 + $0x20] sm:$0xff pattern:$0x73625140]
    %v136 = vld.sshfl [vmem:[#allocation1 + $0x28] sm:$0xff pattern:$0x73625140]
    %v137 = vld.sshfl [vmem:[#allocation1 + $0x30] sm:$0xff pattern:$0x73625140]
    %v138 = vld.sshfl [vmem:[#allocation1 + $0x38] sm:$0xff pattern:$0x73625140]
    %v147 = vsel %vm118, 0.0, %v131
    %v148 = vsel %vm119, 0.0, %v132
    %v149 = vsel %vm120, 0.0, %v133
    %v150 = vsel %vm121, 0.0, %v134
    %v151 = vsel %vm122, 0.0, %v135
    %v152 = vsel %vm123, 0.0, %v136
    %v153 = vsel %vm124, 0.0, %v137
    %v154 = vsel %vm125, 0.0, %v138
    %157 = vst [vmem:[#allocation1] ss:$4 sm:$0xff] %v116
    %s158 = scalar_lea.vmem [#allocation1], 32
    %159 = vst [vmem:[%s158] ss:$4 sm:$0xff] %v117
    %v160 = vld.sshfl [vmem:[#allocation1] sm:$0xff pattern:$0x73625140]
    %v161 = vld.sshfl [vmem:[#allocation1 + $0x8] sm:$0xff pattern:$0x73625140]
    %v162 = vld.sshfl [vmem:[#allocation1 + $0x10] sm:$0xff pattern:$0x73625140]
    %v163 = vld.sshfl [vmem:[#allocation1 + $0x18] sm:$0xff pattern:$0x73625140]
    %v164 = vld.sshfl [vmem:[#allocation1 + $0x20] sm:$0xff pattern:$0x73625140]
    %v165 = vld.sshfl [vmem:[#allocation1 + $0x28] sm:$0xff pattern:$0x73625140]
    %v166 = vld.sshfl [vmem:[#allocation1 + $0x30] sm:$0xff pattern:$0x73625140]
    %v167 = vld.sshfl [vmem:[#allocation1 + $0x38] sm:$0xff pattern:$0x73625140]
    %v176 = vsel %vm108, %v160, %v147
    %v177 = vsel %vm109, %v161, %v148
    %v178 = vsel %vm110, %v162, %v149
    %v179 = vsel %vm111, %v163, %v150
    %v180 = vsel %vm112, %v164, %v151
    %v181 = vsel %vm113, %v165, %v152
    %v182 = vsel %vm114, %v166, %v153
    %v183 = vsel %vm115, %v167, %v154
    %v192 = vrot.slane %v177, 6
    %v193 = vrot.slane %v178, 4
    %v194 = vrot.slane %v179, 2
    %v195 = vrot.slane %v181, 6
    %v196 = vrot.slane %v182, 4
    %v197 = vrot.slane %v183, 2
    %vm198 = vcmask 1041408
    %v199 = vsel %vm198, %v176, %v192
    %vm200 = vcmask 1045508
    %v201 = vsel %vm200, %v193, %v194
    %vm202 = vcmask 1043456
    %v203 = vsel %vm202, %v199, %v201
    %v204 = vsel %vm198, %v180, %v195
    %v205 = vsel %vm200, %v196, %v197
    %v206 = vsel %vm202, %v204, %v205
    %v209 = vadd.f32 %v25, %v203
    %v210 = vadd.f32 %v26, %v206
    %211 = vst [vmem:[#allocation7] sm:$0xff] %v209
    %212 = vst [vmem:[#allocation7 + $0x8] sm:$0xff] %v210
    // Predicated region
    $region10: #{tpu_custom_call.1} parent=1 // pred_check
      _
    $region11: #{tpu_custom_call.1} parent=1 // pred_check_branch
      %214 = sbr.rel (0) target = $region13
    $region12: #{tpu_custom_call.1} parent=1 // pred_region
      %216 = vsyncadd [#allocation6], 0
      %s218 = sshll.u32 [#allocation7], 4
      %s219 = int_to_ptr.vmem [resolvable:$true] %s218
      %s220 = sshll.u32 %s2, 4
      %s221 = int_to_ptr.hbm [resolvable:$true] %s220
      %223 = dma.vmem_to_hbm [thread:$0]  %s219, 256, %s221, [#allocation6]
    $region13: #{tpu_custom_call.1} parent=1 // pred_fallthru
      _
    // Predicated region
    $region14: #{tpu_custom_call.1} parent=1 // pred_check
      _
    $region15: #{tpu_custom_call.1} parent=1 // pred_check_branch
      %225 = sbr.rel (0) target = $region17
    $region16: #{tpu_custom_call.1} parent=1 // pred_region
      %227 = dma.done [#allocation6], 256
    $region17: #{tpu_custom_call.1} parent=1 // pred_fallthru
      _
    %228 = vsyncpa [#allocation5], 1
    %229 = vsyncpa [#allocation6], 1

</llo_original>
